<compile_context>
chip_gen: v5e
topology: v5e:2x2
jax: 0.10.0
libtpu: 0.0.40
codegen_flags: <defaults>
</compile_context>

<pallas_src>
import functools

import jax
import jax.numpy as jnp
from jax.experimental import pallas as pl
from jax.experimental.pallas import tpu as pltpu


def _round_up(x, m):
    return ((x + m - 1) // m) * m


def _tpu_vmem_capacity():
    """Physical VMEM bytes per core; conservative (v7x-sized) 64 MiB fallback."""
    try:
        info = pltpu.get_tpu_info()
        return int(getattr(info, "vmem_capacity_bytes", 64 * 1024 * 1024))
    except Exception:
        return 64 * 1024 * 1024


def _pick_chunk(width):
    """Hidden chunk width for the in-kernel loop (bounds the ReLU intermediate)."""
    if width <= 512:
        return width
    for c in (512, 256, 128):
        if width % c == 0:
            return c
    return width


def _ffn_compute(x, w1_ref, b1_ref, w2_ref, acc, *, tc, n_c):
    """acc += ReLU(x @ w1 + b1) @ w2, walking the hidden dim in tc-wide chunks."""
    for c in range(n_c):                      # static chunk count -> static slices
        sl = pl.ds(c * tc, tc)
        h = jnp.dot(x, w1_ref[:, sl], preferred_element_type=jnp.float32)
        h = jnp.maximum(h + b1_ref[:, sl].astype(jnp.float32), 0.0)
        acc = acc + jnp.dot(h.astype(w2_ref.dtype), w2_ref[sl, :],
                            preferred_element_type=jnp.float32)
    return acc


def _layernorm(y, gamma, beta, eps):
    mean = jnp.mean(y, axis=-1, keepdims=True)
    var = jnp.mean((y - mean) * (y - mean), axis=-1, keepdims=True)
    y = (y - mean) * jax.lax.rsqrt(var + eps)
    return y * gamma + beta


def _ffn_resident_kernel(x_ref, w1_ref, b1_ref, w2_ref, b2_ref, g_ref, beta_ref,
                         o_ref, *, eps, tc, n_c):
    """Weights fully VMEM-resident; grid = (token_tiles,)."""
    x = x_ref[...]
    # Fold residual + bias2 into the accumulator init (saves an epilogue pass).
    acc = x.astype(jnp.float32) + b2_ref[...].astype(jnp.float32)
    acc = _ffn_compute(x, w1_ref, b1_ref, w2_ref, acc, tc=tc, n_c=n_c)
    y = _layernorm(acc, g_ref[...].astype(jnp.float32),
                   beta_ref[...].astype(jnp.float32), eps)
    o_ref[...] = y.astype(o_ref.dtype)


def _ffn_tiled_kernel(x_ref, w1_ref, b1_ref, w2_ref, b2_ref, g_ref, beta_ref,
                      o_ref, acc_ref, *, eps, tc, n_c):
    """Fallback when weights don't fit VMEM; grid = (token_tiles, hidden_tiles)."""
    k = pl.program_id(1)
    x = x_ref[...]

    @pl.when(k == 0)
    def _():
        acc_ref[...] = x.astype(jnp.float32) + b2_ref[...].astype(jnp.float32)

    acc_ref[...] = _ffn_compute(x, w1_ref, b1_ref, w2_ref, acc_ref[...],
                                tc=tc, n_c=n_c)

    @pl.when(k == pl.num_programs(1) - 1)
    def _():
        y = _layernorm(acc_ref[...], g_ref[...].astype(jnp.float32),
                       beta_ref[...].astype(jnp.float32), eps)
        o_ref[...] = y.astype(o_ref.dtype)


def ffn_pallas(x, w1, b1, w2, b2, gamma, beta, *, eps=1e-5, tm=256):
    """x: (seq, batch, d_model) -> (seq, batch, d_model)."""
    seq, batch, d_model = x.shape
    hidden = w1.shape[1]
    assert d_model % 128 == 0, "d_model must be a multiple of 128 (lane width)"
    assert hidden % 128 == 0, "hidden_dim must be a multiple of 128 (lane width)"

    tokens = seq * batch
    x_itemsize = jnp.dtype(x.dtype).itemsize
    w_itemsize = jnp.dtype(w1.dtype).itemsize
    sublane = max(8, 32 // max(1, x_itemsize))       # 8 f32 / 16 bf16 / 32 int8

    vmem_cap = _tpu_vmem_capacity()
    resident_budget = int(0.70 * vmem_cap)           # ~45 MiB v7x, ~90 MiB v5e/v6e
    weight_bytes = 2 * d_model * hidden * w_itemsize

    def act_bytes(tm_):
        # double-buffered x & out tiles + f32 accumulator + <=512-wide f32 h chunk
        return (4 * tm_ * d_model * x_itemsize
                + tm_ * d_model * 4
                + tm_ * min(hidden, 512) * 4)

    small_bytes = 2 * (hidden + 3 * d_model) * 4 + (1 << 20)   # biases/LN + slack

    # ---- token tiling (no pad copy when one tile covers all tokens) ---------
    single_tile_max = max(tm, 512)
    if tokens <= single_tile_max:
        tm_eff, tokens_p, n_i = tokens, tokens, 1    # full-dim block: no padding
    else:
        tm_eff = _round_up(tm, sublane)
        tokens_p = _round_up(tokens, tm_eff)
        n_i = tokens_p // tm_eff

    # ---- weight residency decision (count 2x weights: pipeline may double-buffer)
    resident = (2 * weight_bytes + act_bytes(tm_eff) + small_bytes
                <= resident_budget)

    if resident:
        tk, n_k = hidden, 1
    else:
        # Fewer token tiles => weights re-streamed fewer times.
        if tokens > tm_eff:
            tm_eff = _round_up(min(512, tokens), sublane)
            tokens_p = _round_up(tokens, tm_eff)
            n_i = tokens_p // tm_eff
        # Prefer tk >= 512 so the strided w1 column-tile DMA keeps >=1 KiB rows.
        cands = [t for t in range(512, hidden, 512) if hidden % t == 0]
        if not cands:
            cands = [t for t in range(128, hidden, 128) if hidden % t == 0]
        if not cands:
            cands = [hidden]
        fit = [t for t in cands
               if (2 * (2 * d_model * t * w_itemsize) + act_bytes(tm_eff)
                   + small_bytes) <= resident_budget]
        tk = max(fit) if fit else min(cands)
        n_k = hidden // tk

    tc = _pick_chunk(tk)
    n_c = tk // tc

    # ---- VMEM limit clamped to the chip's physical capacity -----------------
    if resident:
        vmem_need = 2 * weight_bytes + act_bytes(tm_eff) + small_bytes
    else:
        vmem_need = (2 * (2 * d_model * tk * w_itemsize)
                     + act_bytes(tm_eff) + small_bytes)
    vmem_limit = int(max(32 << 20, vmem_need + (4 << 20)))
    vmem_limit = int(min(vmem_limit, vmem_cap - (2 << 20)))

    # ---- flatten / (maybe) pad ----------------------------------------------
    x2 = x.reshape(tokens, d_model)
    if tokens_p != tokens:
        x2 = jnp.pad(x2, ((0, tokens_p - tokens), (0, 0)))
    b1_2 = b1.reshape(1, hidden)
    b2_2 = b2.reshape(1, d_model)
    g_2 = gamma.reshape(1, d_model)
    be_2 = beta.reshape(1, d_model)

    weight_fetches = 1 if resident else n_i           # honest HBM byte count
    cost = pl.CostEstimate(
        flops=4 * tokens_p * d_model * hidden,
        transcendentals=tokens_p,
        bytes_accessed=(2 * tokens_p * d_model * x_itemsize
                        + weight_fetches * weight_bytes
                        + (hidden + 3 * d_model) * 4))

    if resident:
        kernel = functools.partial(_ffn_resident_kernel, eps=eps, tc=tc, n_c=n_c)
        out2 = pl.pallas_call(
            kernel,
            out_shape=jax.ShapeDtypeStruct((tokens_p, d_model), x.dtype),
            grid_spec=pltpu.PrefetchScalarGridSpec(
                num_scalar_prefetch=0,
                grid=(n_i,),
                in_specs=[
                    pl.BlockSpec((tm_eff, d_model), lambda i: (i, 0)),    # x
                    pl.BlockSpec((d_model, hidden), lambda i: (0, 0)),    # w1
                    pl.BlockSpec((1, hidden), lambda i: (0, 0)),          # b1
                    pl.BlockSpec((hidden, d_model), lambda i: (0, 0)),    # w2
                    pl.BlockSpec((1, d_model), lambda i: (0, 0)),         # b2
                    pl.BlockSpec((1, d_model), lambda i: (0, 0)),         # gamma
                    pl.BlockSpec((1, d_model), lambda i: (0, 0)),         # beta
                ],
                out_specs=pl.BlockSpec((tm_eff, d_model), lambda i: (i, 0)),
            ),
            compiler_params=pltpu.CompilerParams(
                dimension_semantics=("parallel",),
                vmem_limit_bytes=vmem_limit),
            cost_estimate=cost,
        )(x2, w1, b1_2, w2, b2_2, g_2, be_2)
    else:
        kernel = functools.partial(_ffn_tiled_kernel, eps=eps, tc=tc, n_c=n_c)
        out2 = pl.pallas_call(
            kernel,
            out_shape=jax.ShapeDtypeStruct((tokens_p, d_model), x.dtype),
            grid_spec=pltpu.PrefetchScalarGridSpec(
                num_scalar_prefetch=0,
                grid=(n_i, n_k),
                in_specs=[
                    pl.BlockSpec((tm_eff, d_model), lambda i, k: (i, 0)),  # x
                    pl.BlockSpec((d_model, tk), lambda i, k: (0, k)),      # w1
                    pl.BlockSpec((1, tk), lambda i, k: (0, k)),            # b1
                    pl.BlockSpec((tk, d_model), lambda i, k: (k, 0)),      # w2
                    pl.BlockSpec((1, d_model), lambda i, k: (0, 0)),       # b2
                    pl.BlockSpec((1, d_model), lambda i, k: (0, 0)),       # gamma
                    pl.BlockSpec((1, d_model), lambda i, k: (0, 0)),       # beta
                ],
                out_specs=pl.BlockSpec((tm_eff, d_model), lambda i, k: (i, 0)),
                scratch_shapes=[pltpu.VMEM((tm_eff, d_model), jnp.float32)],
            ),
            compiler_params=pltpu.CompilerParams(
                dimension_semantics=("parallel", "arbitrary"),
                vmem_limit_bytes=vmem_limit),
            cost_estimate=cost,
        )(x2, w1, b1_2, w2, b2_2, g_2, be_2)

    if tokens_p != tokens:
        out2 = out2[:tokens]
    return out2.reshape(seq, batch, d_model)


def ffn_reference(x, w1, b1, w2, b2, gamma, beta, eps=1e-5):
    h = jnp.maximum(x @ w1 + b1, 0.0)
    y = h @ w2 + b2
    y = y + x
    mean = jnp.mean(y, axis=-1, keepdims=True)
    var = jnp.mean((y - mean) ** 2, axis=-1, keepdims=True)
    return (y - mean) / jnp.sqrt(var + eps) * gamma + beta


if __name__ == "__main__":
    # Small but lane-aligned shapes: seq=8, batch=2, d_model=128, hidden=256.
    seq, batch, d_model, hidden = 8, 2, 128, 256

    key = jax.random.PRNGKey(0)
    k_x, k_w1, k_b1, k_w2, k_b2 = jax.random.split(key, 5)

    x = jax.random.normal(k_x, (seq, batch, d_model), dtype=jnp.float32)

    # Deterministic parameter init (PyTorch-Linear-like uniform fan-in scaling).
    lim1 = 1.0 / (d_model ** 0.5)
    lim2 = 1.0 / (hidden ** 0.5)
    w1 = jax.random.uniform(k_w1, (d_model, hidden), jnp.float32, -lim1, lim1)
    b1 = jax.random.uniform(k_b1, (hidden,), jnp.float32, -lim1, lim1)
    w2 = jax.random.uniform(k_w2, (hidden, d_model), jnp.float32, -lim2, lim2)
    b2 = jax.random.uniform(k_b2, (d_model,), jnp.float32, -lim2, lim2)
    gamma = jnp.ones((d_model,), jnp.float32)   # LayerNorm weight
    beta = jnp.zeros((d_model,), jnp.float32)   # LayerNorm bias

    out = ffn_pallas(x, w1, b1, w2, b2, gamma, beta)
    out = jax.block_until_ready(out)

    ref = ffn_reference(x, w1, b1, w2, b2, gamma, beta)
    assert out.shape == (seq, batch, d_model)
    assert jnp.allclose(out, ref, atol=1e-4, rtol=1e-4), "mismatch vs reference"

    print("KERNEL_OK")
</pallas_src>

<mosaic_0001>
module attributes {stable_mosaic.version = 11 : i64} {
  func.func @_ffn_resident_kernel(%arg0: i32, %arg1: memref<16x128xf32, #tpu.memory_space<vmem>>, %arg2: memref<128x256xf32, #tpu.memory_space<vmem>>, %arg3: memref<1x256xf32, #tpu.memory_space<vmem>>, %arg4: memref<256x128xf32, #tpu.memory_space<vmem>>, %arg5: memref<1x128xf32, #tpu.memory_space<vmem>>, %arg6: memref<1x128xf32, #tpu.memory_space<vmem>>, %arg7: memref<1x128xf32, #tpu.memory_space<vmem>>, %arg8: memref<16x128xf32, #tpu.memory_space<vmem>>) attributes {dimension_semantics = [#tpu.dimension_semantics<parallel>], iteration_bounds = array<i64: 1>, scalar_prefetch = 0 : i64, scratch_operands = 0 : i64, tpu.core_type = #tpu.core_type<tc>, window_params = [{transform_indices = @transform_0, window_bounds = array<i64: 16, 128>}, {pipeline_mode = #tpu.pipeline_mode<synchronous>, transform_indices = @transform_1, window_bounds = array<i64: 128, 256>}, {pipeline_mode = #tpu.pipeline_mode<synchronous>, transform_indices = @transform_2, window_bounds = array<i64: 1, 256>}, {pipeline_mode = #tpu.pipeline_mode<synchronous>, transform_indices = @transform_3, window_bounds = array<i64: 256, 128>}, {pipeline_mode = #tpu.pipeline_mode<synchronous>, transform_indices = @transform_4, window_bounds = array<i64: 1, 128>}, {pipeline_mode = #tpu.pipeline_mode<synchronous>, transform_indices = @transform_5, window_bounds = array<i64: 1, 128>}, {pipeline_mode = #tpu.pipeline_mode<synchronous>, transform_indices = @transform_6, window_bounds = array<i64: 1, 128>}, {transform_indices = @transform_7, window_bounds = array<i64: 16, 128>}]} {
    %c0 = arith.constant 0 : index
    %c0_0 = arith.constant 0 : index
    %0 = vector.load %arg1[%c0, %c0_0] : memref<16x128xf32, #tpu.memory_space<vmem>>, vector<16x128xf32>
    %c0_1 = arith.constant 0 : index
    %c0_2 = arith.constant 0 : index
    %1 = vector.load %arg5[%c0_1, %c0_2] : memref<1x128xf32, #tpu.memory_space<vmem>>, vector<1x128xf32>
    %2 = vector.broadcast %1 : vector<1x128xf32> to vector<16x128xf32>
    %3 = arith.addf %0, %2 : vector<16x128xf32>
    %c0_3 = arith.constant 0 : index
    %c0_4 = arith.constant 0 : index
    %4 = vector.load %arg2[%c0_3, %c0_4] : memref<128x256xf32, #tpu.memory_space<vmem>>, vector<128x256xf32>
    %cst = arith.constant dense<0.000000e+00> : vector<16x256xf32>
    %5 = tpu.matmul %0, %4, %cst {dimension_numbers = #tpu.dot_dimension_numbers<[1], [0], [0], [1], [0, 0, 1, 1], [], []>} : vector<16x128xf32>, vector<128x256xf32>, vector<16x256xf32> -> vector<16x256xf32>
    %c0_5 = arith.constant 0 : index
    %c0_6 = arith.constant 0 : index
    %6 = vector.load %arg3[%c0_5, %c0_6] : memref<1x256xf32, #tpu.memory_space<vmem>>, vector<1x256xf32>
    %7 = vector.broadcast %6 : vector<1x256xf32> to vector<16x256xf32>
    %8 = arith.addf %5, %7 : vector<16x256xf32>
    %cst_7 = arith.constant 0.000000e+00 : f32
    %9 = vector.broadcast %cst_7 : f32 to vector<16x256xf32>
    %10 = arith.maximumf %8, %9 : vector<16x256xf32>
    %c0_8 = arith.constant 0 : index
    %c0_9 = arith.constant 0 : index
    %11 = vector.load %arg4[%c0_8, %c0_9] : memref<256x128xf32, #tpu.memory_space<vmem>>, vector<256x128xf32>
    %cst_10 = arith.constant dense<0.000000e+00> : vector<16x128xf32>
    %12 = tpu.matmul %10, %11, %cst_10 {dimension_numbers = #tpu.dot_dimension_numbers<[1], [0], [0], [1], [0, 0, 1, 1], [], []>} : vector<16x256xf32>, vector<256x128xf32>, vector<16x128xf32> -> vector<16x128xf32>
    %13 = arith.addf %3, %12 : vector<16x128xf32>
    %c0_11 = arith.constant 0 : index
    %c0_12 = arith.constant 0 : index
    %14 = vector.load %arg6[%c0_11, %c0_12] : memref<1x128xf32, #tpu.memory_space<vmem>>, vector<1x128xf32>
    %c0_13 = arith.constant 0 : index
    %c0_14 = arith.constant 0 : index
    %15 = vector.load %arg7[%c0_13, %c0_14] : memref<1x128xf32, #tpu.memory_space<vmem>>, vector<1x128xf32>
    %cst_15 = arith.constant dense<0.000000e+00> : vector<16xf32>
    %16 = vector.multi_reduction <add>, %13, %cst_15 [1] : vector<16x128xf32> to vector<16xf32>
    %17 = vector.shape_cast %16 : vector<16xf32> to vector<16x1xf32>
    %cst_16 = arith.constant 1.280000e+02 : f32
    %18 = vector.broadcast %cst_16 : f32 to vector<16x1xf32>
    %19 = arith.divf %17, %18 : vector<16x1xf32>
    %20 = vector.broadcast %19 : vector<16x1xf32> to vector<16x128xf32>
    %21 = arith.subf %13, %20 : vector<16x128xf32>
    %22 = vector.broadcast %19 : vector<16x1xf32> to vector<16x128xf32>
    %23 = arith.subf %13, %22 : vector<16x128xf32>
    %24 = arith.mulf %21, %23 : vector<16x128xf32>
    %cst_17 = arith.constant dense<0.000000e+00> : vector<16xf32>
    %25 = vector.multi_reduction <add>, %24, %cst_17 [1] : vector<16x128xf32> to vector<16xf32>
    %26 = vector.shape_cast %25 : vector<16xf32> to vector<16x1xf32>
    %cst_18 = arith.constant 1.280000e+02 : f32
    %27 = vector.broadcast %cst_18 : f32 to vector<16x1xf32>
    %28 = arith.divf %26, %27 : vector<16x1xf32>
    %29 = vector.broadcast %19 : vector<16x1xf32> to vector<16x128xf32>
    %30 = arith.subf %13, %29 : vector<16x128xf32>
    %cst_19 = arith.constant 9.99999974E-6 : f32
    %31 = vector.broadcast %cst_19 : f32 to vector<16x1xf32>
    %32 = arith.addf %28, %31 : vector<16x1xf32>
    %33 = math.rsqrt %32 : vector<16x1xf32>
    %34 = vector.broadcast %33 : vector<16x1xf32> to vector<16x128xf32>
    %35 = arith.mulf %30, %34 : vector<16x128xf32>
    %36 = vector.broadcast %14 : vector<1x128xf32> to vector<16x128xf32>
    %37 = arith.mulf %35, %36 : vector<16x128xf32>
    %38 = vector.broadcast %15 : vector<1x128xf32> to vector<16x128xf32>
    %39 = arith.addf %37, %38 : vector<16x128xf32>
    %c0_20 = arith.constant 0 : index
    %c0_21 = arith.constant 0 : index
    %40 = vector.load %arg8[%c0_20, %c0_21] : memref<16x128xf32, #tpu.memory_space<vmem>>, vector<16x128xf32>
    tpu.vector_store %arg8[%c0_20, %c0_21], %39 {strides = array<i32>} : memref<16x128xf32, #tpu.memory_space<vmem>>, vector<16x128xf32>,
    return
  }
  func.func @transform_0(%arg0: i32) -> (i32, i32) {
    %c0_i32 = arith.constant 0 : i32
    %c0_i32_0 = arith.constant 0 : i32
    return %arg0, %c0_i32 : i32, i32
  }
  func.func @transform_1(%arg0: i32) -> (i32, i32) {
    %c0_i32 = arith.constant 0 : i32
    %c0_i32_0 = arith.constant 0 : i32
    %c0_i32_1 = arith.constant 0 : i32
    return %c0_i32, %c0_i32_0 : i32, i32
  }
  func.func @transform_2(%arg0: i32) -> (i32, i32) {
    %c0_i32 = arith.constant 0 : i32
    %c0_i32_0 = arith.constant 0 : i32
    %c0_i32_1 = arith.constant 0 : i32
    return %c0_i32, %c0_i32_0 : i32, i32
  }
  func.func @transform_3(%arg0: i32) -> (i32, i32) {
    %c0_i32 = arith.constant 0 : i32
    %c0_i32_0 = arith.constant 0 : i32
    %c0_i32_1 = arith.constant 0 : i32
    return %c0_i32, %c0_i32_0 : i32, i32
  }
  func.func @transform_4(%arg0: i32) -> (i32, i32) {
    %c0_i32 = arith.constant 0 : i32
    %c0_i32_0 = arith.constant 0 : i32
    %c0_i32_1 = arith.constant 0 : i32
    return %c0_i32, %c0_i32_0 : i32, i32
  }
  func.func @transform_5(%arg0: i32) -> (i32, i32) {
    %c0_i32 = arith.constant 0 : i32
    %c0_i32_0 = arith.constant 0 : i32
    %c0_i32_1 = arith.constant 0 : i32
    return %c0_i32, %c0_i32_0 : i32, i32
  }
  func.func @transform_6(%arg0: i32) -> (i32, i32) {
    %c0_i32 = arith.constant 0 : i32
    %c0_i32_0 = arith.constant 0 : i32
    %c0_i32_1 = arith.constant 0 : i32
    return %c0_i32, %c0_i32_0 : i32, i32
  }
  func.func @transform_7(%arg0: i32) -> (i32, i32) {
    %c0_i32 = arith.constant 0 : i32
    %c0_i32_0 = arith.constant 0 : i32
    return %arg0, %c0_i32 : i32, i32
  }
}

</mosaic_0001>

<llo_original>
// kernel: tpu_custom_call.1
$region0: #{tpu_custom_call.1}
  #allocation0 [shape = 'u32[]', space=smem, size = 0x4, offset = 0x4, fixed_abs, tag = 'smem constant byte address 0x4 - core index']
  #allocation1 [shape = 'u32[72,128]{1,0:T(1,128)}', space=vmem, size = 0x9000, scoped, tag = 'internal scratch']
  %s0 = inlined_call_operand.hbm [shape: f32[16,128], index: 0, kind: input, shape index: {}]
  %s1 = inlined_call_operand.hbm [shape: f32[128,256], index: 1, kind: input, shape index: {}]
  %s2 = inlined_call_operand.hbm [shape: f32[1,256], index: 2, kind: input, shape index: {}]
  %s3 = inlined_call_operand.hbm [shape: f32[256,128], index: 3, kind: input, shape index: {}]
  %s4 = inlined_call_operand.vmem [shape: f32[1,128], index: 4, kind: input, shape index: {}]
  %s5 = inlined_call_operand.vmem [shape: f32[1,128], index: 5, kind: input, shape index: {}]
  %s6 = inlined_call_operand.vmem [shape: f32[1,128], index: 6, kind: input, shape index: {}]
  %s7 = inlined_call_operand.hbm [shape: f32[16,128], index: 7, kind: output, shape index: {}]
  %s8 = sld [smem:[#allocation0]]
  $region54: #{tpu_custom_call.1} parent=0
    _
  %s10 = ssub.s32 1, %s8
  %s11 = scalar_select 0, %s10, %s8
  $region1: #{tpu_custom_call.1} parent=0
    #allocation2 [shape = 'u8[8192]{0}', space=vmem, size = 0x2000, scoped, tag = 'input window, operand 0, single buffered']
    #allocation3 [shape = 's32[1]{0}', space=sflag, size = 0x4, scoped, tag = 'scoped memory for tpu_custom_call.1']
    #allocation4 [shape = 's32[1]{0}', space=sflag, size = 0x4, scoped, tag = 'scoped memory for tpu_custom_call.1']
    #allocation5 [shape = 'u8[131072]{0}', space=vmem, size = 0x20000, scoped, tag = 'input window, operand 1, single buffered']
    #allocation6 [shape = 's32[1]{0}', space=sflag, size = 0x4, scoped, tag = 'scoped memory for tpu_custom_call.1']
    #allocation7 [shape = 'u8[1024]{0}', space=vmem, size = 0x400, scoped, tag = 'input window, operand 2, single buffered']
    #allocation8 [shape = 'u8[131072]{0}', space=vmem, size = 0x20000, scoped, tag = 'input window, operand 3, single buffered']
    #allocation9 [shape = 's32[1]{0}', space=sflag, size = 0x4, scoped, tag = 'scoped memory for tpu_custom_call.1']
    #allocation10 [shape = 'u8[8192]{0}', space=vmem, size = 0x2000, scoped, tag = 'output window, operand 0, single buffered']
    %12 = vsyncpa [#allocation3], 0
    %13 = vsyncpa [#allocation6], 0
    %14 = vsyncpa [#allocation9], 0
    %15 = vsyncpa [#allocation4], 0
    // Predicated region
    $region2: #{tpu_custom_call.1} parent=1 // pred_check
      _
    $region3: #{tpu_custom_call.1} parent=1 // pred_check_branch
      %17 = sbr.rel (0) target = $region5
    $region4: #{tpu_custom_call.1} parent=1 // pred_region
      %19 = vsyncadd [#allocation3], 0
      %s20 = sshll.u32 %s0, 4
      %s21 = int_to_ptr.hbm [resolvable:$true] %s20
      %s22 = sshll.u32 [#allocation2], 4
      %s23 = int_to_ptr.vmem [resolvable:$true] %s22
      %28 = dma.hbm_to_vmem [thread:$0]  %s21, 256, %s23, [#allocation3], 128, 128, 8
    $region5: #{tpu_custom_call.1} parent=1 // pred_fallthru
      _
    // Predicated region
    $region6: #{tpu_custom_call.1} parent=1 // pred_check
      _
    $region7: #{tpu_custom_call.1} parent=1 // pred_check_branch
      %30 = sbr.rel (0) target = $region9
    $region8: #{tpu_custom_call.1} parent=1 // pred_region
      %32 = vsyncadd [#allocation6], 0
      %s33 = sshll.u32 %s1, 4
      %s34 = int_to_ptr.hbm [resolvable:$true] %s33
      %s35 = sshll.u32 [#allocation5], 4
      %s36 = int_to_ptr.vmem [resolvable:$true] %s35
      %41 = dma.hbm_to_vmem [thread:$0]  %s34, 4096, %s36, [#allocation6], 256, 256, 16
    $region9: #{tpu_custom_call.1} parent=1 // pred_fallthru
      _
    // Predicated region
    $region10: #{tpu_custom_call.1} parent=1 // pred_check
      _
    $region11: #{tpu_custom_call.1} parent=1 // pred_check_branch
      %43 = sbr.rel (0) target = $region13
    $region12: #{tpu_custom_call.1} parent=1 // pred_region
      %45 = vsyncadd [#allocation6], 0
      %s47 = sshll.u32 %s2, 4
      %s48 = int_to_ptr.hbm [resolvable:$true] %s47
      %s49 = sshll.u32 [#allocation7], 4
      %s50 = int_to_ptr.vmem [resolvable:$true] %s49
      %52 = dma.hbm_to_vmem [thread:$0]  %s48, 32, %s50, [#allocation6]
    $region13: #{tpu_custom_call.1} parent=1 // pred_fallthru
      _
    // Predicated region
    $region14: #{tpu_custom_call.1} parent=1 // pred_check
      _
    $region15: #{tpu_custom_call.1} parent=1 // pred_check_branch
      %54 = sbr.rel (0) target = $region17
    $region16: #{tpu_custom_call.1} parent=1 // pred_region
      %56 = vsyncadd [#allocation9], 0
      %s57 = sshll.u32 %s3, 4
      %s58 = int_to_ptr.hbm [resolvable:$true] %s57
      %s59 = sshll.u32 [#allocation8], 4
      %s60 = int_to_ptr.vmem [resolvable:$true] %s59
      %65 = dma.hbm_to_vmem [thread:$0]  %s58, 4096, %s60, [#allocation9], 128, 128, 8
    $region17: #{tpu_custom_call.1} parent=1 // pred_fallthru
      _
    // Predicated region
    $region18: #{tpu_custom_call.1} parent=1 // pred_check
      _
    $region19: #{tpu_custom_call.1} parent=1 // pred_check_branch
      %67 = sbr.rel (0) target = $region21
    $region20: #{tpu_custom_call.1} parent=1 // pred_region
      _
    $region21: #{tpu_custom_call.1} parent=1 // pred_fallthru
      _
    // Predicated region
    $region22: #{tpu_custom_call.1} parent=1 // pred_check
      _
    $region23: #{tpu_custom_call.1} parent=1 // pred_check_branch
      %69 = sbr.rel (0) target = $region25
    $region24: #{tpu_custom_call.1} parent=1 // pred_region
      _
    $region25: #{tpu_custom_call.1} parent=1 // pred_fallthru
      _
    // Predicated region
    $region26: #{tpu_custom_call.1} parent=1 // pred_check
      _
    $region27: #{tpu_custom_call.1} parent=1 // pred_check_branch
      %71 = sbr.rel (0) target = $region29
    $region28: #{tpu_custom_call.1} parent=1 // pred_region
      _
    $region29: #{tpu_custom_call.1} parent=1 // pred_fallthru
      _
    // Predicated region
    $region30: #{tpu_custom_call.1} parent=1 // pred_check
      _
    $region31: #{tpu_custom_call.1} parent=1 // pred_check_branch
      %73 = sbr.rel (0) target = $region33
    $region32: #{tpu_custom_call.1} parent=1 // pred_region
      %75 = dma.done [#allocation3], 256
    $region33: #{tpu_custom_call.1} parent=1 // pred_fallthru
      _
    // Predicated region
    $region34: #{tpu_custom_call.1} parent=1 // pred_check
      _
    $region35: #{tpu_custom_call.1} parent=1 // pred_check_branch
      %77 = sbr.rel (0) target = $region37
    $region36: #{tpu_custom_call.1} parent=1 // pred_region
      %79 = dma.done [#allocation6], 4096
    $region37: #{tpu_custom_call.1} parent=1 // pred_fallthru
      _
    // Predicated region
    $region38: #{tpu_custom_call.1} parent=1 // pred_check
      _
    $region39: #{tpu_custom_call.1} parent=1 // pred_check_branch
      %81 = sbr.rel (0) target = $region41
    $region40: #{tpu_custom_call.1} parent=1 // pred_region
      %83 = dma.done [#allocation6], 32
    $region41: #{tpu_custom_call.1} parent=1 // pred_fallthru
      _
    // Predicated region
    $region42: #{tpu_custom_call.1} parent=1 // pred_check
      _
    $region43: #{tpu_custom_call.1} parent=1 // pred_check_branch
      %85 = sbr.rel (0) target = $region45
    $region44: #{tpu_custom_call.1} parent=1 // pred_region
      %87 = dma.done [#allocation9], 4096
    $region45: #{tpu_custom_call.1} parent=1 // pred_fallthru
      _
    %v88 = vld [vmem:[#allocation2] sm:$0xff]
    %v89 = vld [vmem:[#allocation2 + $0x8] sm:$0xff]
    %v90 = vld [vmem:[%s4] sm:$0x1]
    %v92 = vperm.slane %v90, 0
    %v94 = vadd.f32 %v88, %v92
    %v95 = vadd.f32 %v89, %v92
    %v96 = vld [vmem:[#allocation5] sm:$0xff]
    %v97 = vld [vmem:[#allocation5 + $0x8] sm:$0xff]
    %v98 = vld [vmem:[#allocation5 + $0x10] sm:$0xff]
    %v99 = vld [vmem:[#allocation5 + $0x18] sm:$0xff]
    %v100 = vld [vmem:[#allocation5 + $0x20] sm:$0xff]
    %v101 = vld [vmem:[#allocation5 + $0x28] sm:$0xff]
    %v102 = vld [vmem:[#allocation5 + $0x30] sm:$0xff]
    %v103 = vld [vmem:[#allocation5 + $0x38] sm:$0xff]
    %v104 = vld [vmem:[#allocation5 + $0x40] sm:$0xff]
    %v105 = vld [vmem:[#allocation5 + $0x48] sm:$0xff]
    %v106 = vld [vmem:[#allocation5 + $0x50] sm:$0xff]
    %v107 = vld [vmem:[#allocation5 + $0x58] sm:$0xff]
    %v108 = vld [vmem:[#allocation5 + $0x60] sm:$0xff]
    %v109 = vld [vmem:[#allocation5 + $0x68] sm:$0xff]
    %v110 = vld [vmem:[#allocation5 + $0x70] sm:$0xff]
    %v111 = vld [vmem:[#allocation5 + $0x78] sm:$0xff]
    %v112 = vld [vmem:[#allocation5 + $0x80] sm:$0xff]
    %v113 = vld [vmem:[#allocation5 + $0x88] sm:$0xff]
    %v114 = vld [vmem:[#allocation5 + $0x90] sm:$0xff]
    %v115 = vld [vmem:[#allocation5 + $0x98] sm:$0xff]
    %v116 = vld [vmem:[#allocation5 + $0xa0] sm:$0xff]
    %v117 = vld [vmem:[#allocation5 + $0xa8] sm:$0xff]
    %v118 = vld [vmem:[#allocation5 + $0xb0] sm:$0xff]
    %v119 = vld [vmem:[#allocation5 + $0xb8] sm:$0xff]
    %v120 = vld [vmem:[#allocation5 + $0xc0] sm:$0xff]
    %v121 = vld [vmem:[#allocation5 + $0xc8] sm:$0xff]
    %v122 = vld [vmem:[#allocation5 + $0xd0] sm:$0xff]
    %v123 = vld [vmem:[#allocation5 + $0xd8] sm:$0xff]
    %v124 = vld [vmem:[#allocation5 + $0xe0] sm:$0xff]
    %v125 = vld [vmem:[#allocation5 + $0xe8] sm:$0xff]
    %v126 = vld [vmem:[#allocation5 + $0xf0] sm:$0xff]
    %v127 = vld [vmem:[#allocation5 + $0xf8] sm:$0xff]
    %v128 = vld [vmem:[#allocation7] sm:$0x3]
    %v130 = vperm.slane %v128, 0
    %v131 = vperm.slane %v128, 1
    %134 = vmatpush.msra.mxu0 %v126
    %135 = vmatpush.msra.mxu0 %v124
    %136 = vmatpush.msra.mxu0 %v122
    %137 = vmatpush.msra.mxu0 %v120
    %138 = vmatpush.msra.mxu0 %v118
    %139 = vmatpush.msra.mxu0 %v116
    %140 = vmatpush.msra.mxu0 %v114
    %141 = vmatpush.msra.mxu0 %v112
    %142 = vmatpush.msra.mxu0 %v110
    %143 = vmatpush.msra.mxu0 %v108
    %144 = vmatpush.msra.mxu0 %v106
    %145 = vmatpush.msra.mxu0 %v104
    %146 = vmatpush.msra.mxu0 %v102
    %147 = vmatpush.msra.mxu0 %v100
    %148 = vmatpush.msra.mxu0 %v98
    %149 = vmatpush.msra.mxu0 %v96
    %150 = vmatmul.f32.gmra.mxu0 %v88
    %v151 = vpop.f32.mrf.mxu0
    %v152 = vadd.f32 %v130, %v151
    %153 = vmatmul.f32.gmra.mxu0 %v89
    %v154 = vpop.f32.mrf.mxu0
    %v155 = vadd.f32 %v130, %v154
    %156 = vdwg.mxu0
    %157 = vmatpush.msra.mxu0 %v127
    %158 = vmatpush.msra.mxu0 %v125
    %159 = vmatpush.msra.mxu0 %v123
    %160 = vmatpush.msra.mxu0 %v121
    %161 = vmatpush.msra.mxu0 %v119
    %162 = vmatpush.msra.mxu0 %v117
    %163 = vmatpush.msra.mxu0 %v115
    %164 = vmatpush.msra.mxu0 %v113
    %165 = vmatpush.msra.mxu0 %v111
    %166 = vmatpush.msra.mxu0 %v109
    %167 = vmatpush.msra.mxu0 %v107
    %168 = vmatpush.msra.mxu0 %v105
    %169 = vmatpush.msra.mxu0 %v103
    %170 = vmatpush.msra.mxu0 %v101
    %171 = vmatpush.msra.mxu0 %v99
    %172 = vmatpush.msra.mxu0 %v97
    %173 = vmatmul.f32.gmra.mxu0 %v88
    %v174 = vpop.f32.mrf.mxu0
    %v175 = vadd.f32 %v131, %v174
    %176 = vmatmul.f32.gmra.mxu0 %v89
    %v177 = vpop.f32.mrf.mxu0
    %v178 = vadd.f32 %v131, %v177
    %179 = vdwg.mxu0
    %v180 = vmax.f32 %v152, 0.0
    %v181 = vmax.f32 %v175, 0.0
    %v182 = vmax.f32 %v155, 0.0
    %v183 = vmax.f32 %v178, 0.0
    %v184 = vld [vmem:[#allocation8] sm:$0xff]
    %v185 = vld [vmem:[#allocation8 + $0x8] sm:$0xff]
    %v186 = vld [vmem:[#allocation8 + $0x10] sm:$0xff]
    %v187 = vld [vmem:[#allocation8 + $0x18] sm:$0xff]
    %v188 = vld [vmem:[#allocation8 + $0x20] sm:$0xff]
    %v189 = vld [vmem:[#allocation8 + $0x28] sm:$0xff]
    %v190 = vld [vmem:[#allocation8 + $0x30] sm:$0xff]
    %v191 = vld [vmem:[#allocation8 + $0x38] sm:$0xff]
    %v192 = vld [vmem:[#allocation8 + $0x40] sm:$0xff]
    %v193 = vld [vmem:[#allocation8 + $0x48] sm:$0xff]
    %v194 = vld [vmem:[#allocation8 + $0x50] sm:$0xff]
    %v195 = vld [vmem:[#allocation8 + $0x58] sm:$0xff]
    %v196 = vld [vmem:[#allocation8 + $0x60] sm:$0xff]
    %v197 = vld [vmem:[#allocation8 + $0x68] sm:$0xff]
    %v198 = vld [vmem:[#allocation8 + $0x70] sm:$0xff]
    %v199 = vld [vmem:[#allocation8 + $0x78] sm:$0xff]
    %v200 = vld [vmem:[#allocation8 + $0x80] sm:$0xff]
    %v201 = vld [vmem:[#allocation8 + $0x88] sm:$0xff]
    %v202 = vld [vmem:[#allocation8 + $0x90] sm:$0xff]
    %v203 = vld [vmem:[#allocation8 + $0x98] sm:$0xff]
    %v204 = vld [vmem:[#allocation8 + $0xa0] sm:$0xff]
    %v205 = vld [vmem:[#allocation8 + $0xa8] sm:$0xff]
    %v206 = vld [vmem:[#allocation8 + $0xb0] sm:$0xff]
    %v207 = vld [vmem:[#allocation8 + $0xb8] sm:$0xff]
    %v208 = vld [vmem:[#allocation8 + $0xc0] sm:$0xff]
    %v209 = vld [vmem:[#allocation8 + $0xc8] sm:$0xff]
    %v210 = vld [vmem:[#allocation8 + $0xd0] sm:$0xff]
    %v211 = vld [vmem:[#allocation8 + $0xd8] sm:$0xff]
    %v212 = vld [vmem:[#allocation8 + $0xe0] sm:$0xff]
    %v213 = vld [vmem:[#allocation8 + $0xe8] sm:$0xff]
    %v214 = vld [vmem:[#allocation8 + $0xf0] sm:$0xff]
    %v215 = vld [vmem:[#allocation8 + $0xf8] sm:$0xff]
    %216 = vmatpush.msra.mxu0 %v199
    %217 = vmatpush.msra.mxu0 %v198
    %218 = vmatpush.msra.mxu0 %v197
    %219 = vmatpush.msra.mxu0 %v196
    %220 = vmatpush.msra.mxu0 %v195
    %221 = vmatpush.msra.mxu0 %v194
    %222 = vmatpush.msra.mxu0 %v193
    %223 = vmatpush.msra.mxu0 %v192
    %224 = vmatpush.msra.mxu0 %v191
    %225 = vmatpush.msra.mxu0 %v190
    %226 = vmatpush.msra.mxu0 %v189
    %227 = vmatpush.msra.mxu0 %v188
    %228 = vmatpush.msra.mxu0 %v187
    %229 = vmatpush.msra.mxu0 %v186
    %230 = vmatpush.msra.mxu0 %v185
    %231 = vmatpush.msra.mxu0 %v184
    %232 = vmatmul.f32.gmra.mxu0 %v180
    %v233 = vpop.f32.mrf.mxu0
    %v234 = vadd.f32 0.0, %v233
    %235 = vmatmul.f32.gmra.mxu0 %v182
    %v236 = vpop.f32.mrf.mxu0
    %v237 = vadd.f32 0.0, %v236
    %238 = vdwg.mxu0
    %239 = vmatpush.msra.mxu0 %v215
    %240 = vmatpush.msra.mxu0 %v214
    %241 = vmatpush.msra.mxu0 %v213
    %242 = vmatpush.msra.mxu0 %v212
    %243 = vmatpush.msra.mxu0 %v211
    %244 = vmatpush.msra.mxu0 %v210
    %245 = vmatpush.msra.mxu0 %v209
    %246 = vmatpush.msra.mxu0 %v208
    %247 = vmatpush.msra.mxu0 %v207
    %248 = vmatpush.msra.mxu0 %v206
    %249 = vmatpush.msra.mxu0 %v205
    %250 = vmatpush.msra.mxu0 %v204
    %251 = vmatpush.msra.mxu0 %v203
    %252 = vmatpush.msra.mxu0 %v202
    %253 = vmatpush.msra.mxu0 %v201
    %254 = vmatpush.msra.mxu0 %v200
    %255 = vmatmul.f32.gmra.mxu0 %v181
    %v256 = vpop.f32.mrf.mxu0
    %v257 = vadd.f32 %v234, %v256
    %258 = vmatmul.f32.gmra.mxu0 %v183
    %v259 = vpop.f32.mrf.mxu0
    %v260 = vadd.f32 %v237, %v259
    %261 = vdwg.mxu0
    %v262 = vadd.f32 %v94, %v257
    %v263 = vadd.f32 %v95, %v260
    %v264 = vld [vmem:[%s5] sm:$0x1]
    %v265 = vld [vmem:[%s6] sm:$0x1]
    %266 = vadd.xlane.f32.xlu0 %v262
    %v267 = vpop.xlane.xlu0 %266
    %268 = vadd.xlane.f32.xlu0 %v263
    %v269 = vpop.xlane.xlu0 %268
    %v270 = vrcp.pop 128.0
    %v271 = vmul.f32 128.0, %v270
    %v272 = vsub.f32 1.0, %v271
    %v273 = vmul.f32 %v270, %v272
    %v274 = vadd.f32 %v270, %v273
    %vm275 = vweird.f32 %v270
    %v276 = vsel %vm275, %v270, %v274
    %v277 = vmul.f32 %v267, %v276
    %v278 = vmul.f32 %v269, %v276
    %v279 = vsub.f32 %v262, %v277
    %v280 = vsub.f32 %v263, %v278
    %v281 = vmul.f32 %v279, %v279
    %v282 = vmul.f32 %v280, %v280
    %283 = vadd.xlane.f32.xlu0 %v281
    %v284 = vpop.xlane.xlu0 %283
    %285 = vadd.xlane.f32.xlu0 %v282
    %v286 = vpop.xlane.xlu0 %285
    %v287 = vmul.f32 %v284, %v276
    %v288 = vmul.f32 %v286, %v276
    %v289 = vadd.f32 %v287, 1e-05
    %v290 = vadd.f32 %v288, 1e-05
    %v291 = vrsqrt.pop %v289
    %v292 = vmul.f32 %v291, %v289
    %v293 = vmul.f32 %v292, %v291
    %v294 = vmul.f32 0.5, %v293
    %v295 = vsub.f32 1.5, %v294
    %v296 = vmul.f32 %v291, %v295
    %vm297 = vweird.f32 %v289
    %vm298 = vweird.f32 %v291
    %vm299 = vmor %vm297, %vm298
    %v300 = vsel %vm299, %v291, %v296
    %v301 = vrsqrt.pop %v290
    %v302 = vmul.f32 %v301, %v290
    %v303 = vmul.f32 %v302, %v301
    %v304 = vmul.f32 0.5, %v303
    %v305 = vsub.f32 1.5, %v304
    %v306 = vmul.f32 %v301, %v305
    %vm307 = vweird.f32 %v290
    %vm308 = vweird.f32 %v301
    %vm309 = vmor %vm307, %vm308
    %v310 = vsel %vm309, %v301, %v306
    %v311 = vmul.f32 %v279, %v300
    %v312 = vmul.f32 %v280, %v310
    %v314 = vperm.slane %v264, 0
    %v316 = vmul.f32 %v311, %v314
    %v317 = vmul.f32 %v312, %v314
    %v319 = vperm.slane %v265, 0
    %v321 = vadd.f32 %v316, %v319
    %v322 = vadd.f32 %v317, %v319
    %323 = vst [vmem:[#allocation10] sm:$0xff] %v321
    %324 = vst [vmem:[#allocation10 + $0x8] sm:$0xff] %v322
    // Predicated region
    $region46: #{tpu_custom_call.1} parent=1 // pred_check
      _
    $region47: #{tpu_custom_call.1} parent=1 // pred_check_branch
      %326 = sbr.rel (0) target = $region49
    $region48: #{tpu_custom_call.1} parent=1 // pred_region
      %328 = vsyncadd [#allocation4], 0
      %s329 = sshll.u32 [#allocation10], 4
      %s330 = int_to_ptr.vmem [resolvable:$true] %s329
      %s331 = sshll.u32 %s7, 4
      %s332 = int_to_ptr.hbm [resolvable:$true] %s331
      %337 = dma.vmem_to_hbm [thread:$0]  %s330, 256, %s332, [#allocation4], 128, 128, 8
    $region49: #{tpu_custom_call.1} parent=1 // pred_fallthru
      _
    // Predicated region
    $region50: #{tpu_custom_call.1} parent=1 // pred_check
      _
    $region51: #{tpu_custom_call.1} parent=1 // pred_check_branch
      %339 = sbr.rel (0) target = $region53
    $region52: #{tpu_custom_call.1} parent=1 // pred_region
      %341 = dma.done [#allocation4], 256
    $region53: #{tpu_custom_call.1} parent=1 // pred_fallthru
      _
    %342 = vsyncpa [#allocation3], 1
    %343 = vsyncpa [#allocation6], 1
    %344 = vsyncpa [#allocation9], 1
    %345 = vsyncpa [#allocation4], 1

</llo_original>
